<compile_context>
chip_gen: v5e
topology: v5e:2x2
jax: 0.10.0
libtpu: 0.0.40
codegen_flags: <defaults>
</compile_context>

<pallas_src>
import jax
import jax.numpy as jnp
from jax.experimental import pallas as pl
from jax.experimental.pallas import tpu as pltpu


# ----------------------------------------------------------------------------
# Trace-time helpers.
# ----------------------------------------------------------------------------
def _round_up(x: int, m: int) -> int:
    return -(-x // m) * m


def _interp_matrix(out_size: int, in_size: int, dtype=jnp.float32):
    """Dense 1-D bilinear (align_corners=True) interpolation matrix."""
    if out_size == 1:
        src = jnp.zeros((1,), jnp.float32)
    else:
        scale = (in_size - 1) / (out_size - 1)
        src = jnp.arange(out_size, dtype=jnp.float32) * scale
    i0 = jnp.clip(jnp.floor(src).astype(jnp.int32), 0, in_size - 1)
    i1 = jnp.clip(i0 + 1, 0, in_size - 1)
    w1 = src - i0.astype(jnp.float32)
    w0 = 1.0 - w1
    rows = jnp.arange(out_size)
    R = jnp.zeros((out_size, in_size), dtype)
    R = R.at[rows, i0].add(w0.astype(dtype))
    R = R.at[rows, i1].add(w1.astype(dtype))
    return R


def _kron_resize_matrices(h: int, w: int, p: int, dtype):
    """Pre-transposed fused (H,W)->(p,p) and (p,p)->(H,W) resize matrices."""
    ry, rx = _interp_matrix(p, h), _interp_matrix(p, w)   # down
    uy, ux = _interp_matrix(h, p), _interp_matrix(w, p)   # up
    dT = jnp.kron(ry, rx).T.astype(dtype)                 # (h*w, p*p)
    uT = jnp.kron(uy, ux).T.astype(dtype)                 # (p*p, h*w)
    return dT, uT


def _choose_batch_block(n: int, c: int, target_m: int) -> int:
    """Images per grid step: fill the MXU M dim, but (for v7x's 2 TCs) try to
    keep at least two grid steps so dimension_semantics=('parallel',) has
    something to shard."""
    best = 1
    for b in range(1, n + 1):
        if n % b == 0 and b * c <= target_m:
            best = b
    if n // best < 2:                       # keep >= 2 grid steps when possible
        for b in range(best - 1, 0, -1):
            if n % b == 0 and n // b >= 2:
                best = b
                break
    return best


# ----------------------------------------------------------------------------
# Fused kernel: B images per grid step; everything stays on-chip.
# ----------------------------------------------------------------------------
def _fused_seg_kernel(dt_ref, wbd_ref, b_ref, ut_ref, x_ref, o_ref):
    # dt : (HWp, pp)        downsample matrix (pre-transposed, compute dtype)
    # wbd: (B*Kp, B*C)      block-diagonal 1x1 conv weight, f32
    # b  : (B*Kp, 1)        per-row bias, f32
    # ut : (pp, HWp)        upsample matrix (pre-transposed, compute dtype)
    # x  : (1, B*C, HWp)    B batched images, lane-dense
    # o  : (1, B*Kp, HWp)   lane/sublane-dense output slab
    dt = dt_ref[...]
    ut = ut_ref[...]

    # Fused H+W bilinear downsample for all B*C channel-rows at once.
    x = x_ref[0].astype(dt.dtype)                                    # (B*C, HWp)
    s = jnp.dot(x, dt, preferred_element_type=jnp.float32)           # (B*C, pp)

    # 1x1 conv over channels as ONE MXU matmul (block-diag weight) + bias.
    y = jnp.dot(wbd_ref[...], s, preferred_element_type=jnp.float32) # (B*Kp, pp)
    y = y + b_ref[...]                                               # lane bcast

    # Fused H+W bilinear upsample back to full resolution.
    out = jnp.dot(y.astype(ut.dtype), ut, preferred_element_type=jnp.float32)
    o_ref[0] = out.astype(o_ref.dtype)                               # (B*Kp, HWp)


def fused_seg_forward(x_nchw, weight, bias, patch_size, *,
                      compute_dtype=jnp.float32, out_dtype=jnp.float32,
                      mxu_m=256):
    """resize(H,W -> p,p) -> 1x1 conv (backbone stand-in) -> resize back."""
    n, c, h, w = x_nchw.shape
    k = weight.shape[0]
    p = patch_size
    pp = p * p
    hw = h * w
    hw_pad = _round_up(hw, 128)     # lane-dense loads/stores
    k_pad = _round_up(k, 8)         # sublane-dense output slab (7 -> 8)

    # Images per grid step (B*C fills the MXU M dim; ~128 target on v5e,
    # ~256 on v6e/v7x -- pass mxu_m=128 on v5e).
    b_img = _choose_batch_block(n, c, mxu_m)
    g = n // b_img

    # Trace-time constants.
    dT, uT = _kron_resize_matrices(h, w, p, compute_dtype)
    if hw_pad != hw:
        dT = jnp.pad(dT, ((0, hw_pad - hw), (0, 0)))   # zero rows: pad pixels
        uT = jnp.pad(uT, ((0, 0), (0, hw_pad - hw)))   # zero cols: pad outputs
    w_pad = jnp.pad(weight.astype(jnp.float32), ((0, k_pad - k), (0, 0)))
    wbd = jnp.kron(jnp.eye(b_img, dtype=jnp.float32), w_pad)       # (B*Kp, B*C)
    b_pad = jnp.pad(bias.astype(jnp.float32), (0, k_pad - k))
    b_tiled = jnp.tile(b_pad, b_img).reshape(b_img * k_pad, 1)     # (B*Kp, 1)

    # Metadata-only reshapes (contiguous merges/splits); pad lanes only if
    # H*W is not already a multiple of 128.
    xf = x_nchw.reshape(n, c, hw)
    if hw_pad != hw:
        xf = jnp.pad(xf, ((0, 0), (0, 0), (0, hw_pad - hw)))
    xf = xf.reshape(g, b_img * c, hw_pad)

    # Explicit VMEM budget (v7x has 64 MiB physical, 32 MiB scoped default):
    # single-buffered constants + double-buffered I/O blocks + f32 temps.
    cd_sz = jnp.dtype(compute_dtype).itemsize
    est = (2 * hw_pad * pp * cd_sz                                   # dT + uT
           + (b_img * k_pad * b_img * c + b_img * k_pad) * 4         # wbd + b
           + 2 * b_img * c * hw_pad * x_nchw.dtype.itemsize          # x blocks
           + 2 * b_img * k_pad * hw_pad * jnp.dtype(out_dtype).itemsize  # o
           + (b_img * c + 2 * b_img * k_pad) * pp * 4                # s, y
           + b_img * (c + k_pad) * hw_pad * 4)                       # casts
    vmem_limit = int(min(max(2 * est, 8 << 20), 56 << 20))

    out = pl.pallas_call(
        _fused_seg_kernel,
        out_shape=jax.ShapeDtypeStruct((g, b_img * k_pad, hw_pad), out_dtype),
        grid=(g,),
        in_specs=[
            # Constant operands: fetched once, single-buffered (halves their
            # VMEM footprint vs. default double-buffering).
            pl.BlockSpec((hw_pad, pp), lambda i: (0, 0),
                         pipeline_mode=pl.Buffered(1)),
            pl.BlockSpec((b_img * k_pad, b_img * c), lambda i: (0, 0),
                         pipeline_mode=pl.Buffered(1)),
            pl.BlockSpec((b_img * k_pad, 1), lambda i: (0, 0),
                         pipeline_mode=pl.Buffered(1)),
            pl.BlockSpec((pp, hw_pad), lambda i: (0, 0),
                         pipeline_mode=pl.Buffered(1)),
            # Streamed image batch (double-buffered by default).
            pl.BlockSpec((1, b_img * c, hw_pad), lambda i: (i, 0, 0)),
        ],
        out_specs=pl.BlockSpec((1, b_img * k_pad, hw_pad),
                               lambda i: (i, 0, 0)),
        compiler_params=pltpu.CompilerParams(
            dimension_semantics=("parallel",),
            vmem_limit_bytes=vmem_limit),
    )(dT, wbd, b_tiled, uT, xf)

    # Strip the K / HW padding (cheap XLA slice, fuses into consumers).
    out = out.reshape(g, b_img, k_pad, hw_pad)[:, :, :k, :hw]
    return out.reshape(n, k, h, w).astype(out_dtype)


# ----------------------------------------------------------------------------
# Module
# ----------------------------------------------------------------------------
class MinimalGlobalSeg:
    """JAX/Pallas port of MinimalGlobalSeg: resize -> backbone -> resize."""
    # TODO(synk): the full DeepLabV3+/ResNet-101 backbone (ResNet stages, ASPP,
    # decoder) has no compact Pallas translation here; it is stood in by a
    # deterministic 1x1 projection conv with the same I/O contract
    # (in: NxCinxPxP image, out: Nxnum_classesxPxP logits).
    # TODO(synk): for production sizes (patch_size=306, megapixel H,W) the
    # dense Kronecker resize matrices (HW x p^2) no longer fit v7x's 64-MiB
    # VMEM and waste ~H*p/(H+p) FLOPs; switch to the separable form
    # (Ry @ x_hw @ Rx^T and Uy @ y @ Ux^T) with row-tiled output blocks in that
    # regime.

    def __init__(self, num_classes=7, patch_size=306, in_channels=3,
                 compute_dtype=jnp.float32, out_dtype=jnp.float32,
                 mxu_m=256, key=None):
        self.num_classes = num_classes
        self.patch_size = patch_size
        # bf16 recommended on v6e/v7x (halves MXU-operand/HBM/VMEM bytes for
        # the resize matrices); accumulation + conv epilogue stay f32.
        self.compute_dtype = compute_dtype
        self.out_dtype = out_dtype
        self.mxu_m = mxu_m          # use 128 on v5e (4x128x128 MXU)
        key = jax.random.PRNGKey(0) if key is None else key
        kw, kb = jax.random.split(key)
        self.weight = 0.1 * jax.random.normal(
            kw, (num_classes, in_channels), jnp.float32)
        self.bias = 0.1 * jax.random.normal(kb, (num_classes,), jnp.float32)

    def __call__(self, image):
        return fused_seg_forward(image, self.weight, self.bias,
                                 self.patch_size,
                                 compute_dtype=self.compute_dtype,
                                 out_dtype=self.out_dtype,
                                 mxu_m=self.mxu_m)


# ----------------------------------------------------------------------------
# Pure-JAX reference of the same pipeline (correctness sanity check).
# ----------------------------------------------------------------------------
def _ref_forward(model, x):
    _, _, H, W = x.shape
    p = model.patch_size
    ry, rx = _interp_matrix(p, H), _interp_matrix(p, W)
    s = jnp.einsum('ph,nchw,qw->ncpq', ry, x.astype(jnp.float32), rx)
    y = jnp.einsum('kc,ncpq->nkpq', model.weight, s) \
        + model.bias[None, :, None, None]
    uy, ux = _interp_matrix(H, p), _interp_matrix(W, p)
    return jnp.einsum('hp,nkpq,wq->nkhw', uy, y, ux)


if __name__ == "__main__":
    key = jax.random.PRNGKey(0)
    kx, kp = jax.random.split(key)

    # Small shapes consistent with the module: N=8, C=3, 16x16 spatial,
    # patch_size=8, num_classes=7.  N=8 exercises the image-batching path
    # (B=4 images per grid step -> M=12 rows per matmul, grid=(2,)).
    x = jax.random.normal(kx, (8, 3, 16, 16), jnp.float32)

    model = MinimalGlobalSeg(num_classes=7, patch_size=8, in_channels=3,
                             key=kp)

    out = jax.block_until_ready(model(x))
    assert out.shape == (8, 7, 16, 16), out.shape

    ref = jax.block_until_ready(_ref_forward(model, x))
    assert jnp.allclose(out, ref, atol=1e-4, rtol=1e-4), \
        float(jnp.max(jnp.abs(out - ref)))

    # bf16 resize-matrix path (recommended on v6e/v7x): same pipeline, looser
    # tolerance since the interpolation weights / MXU operands are quantized.
    out_bf16 = jax.block_until_ready(
        fused_seg_forward(x, model.weight, model.bias, model.patch_size,
                          compute_dtype=jnp.bfloat16))
    assert out_bf16.shape == (8, 7, 16, 16), out_bf16.shape
    assert jnp.allclose(out_bf16, ref, atol=5e-2, rtol=5e-2), \
        float(jnp.max(jnp.abs(out_bf16 - ref)))

    print("KERNEL_OK")
</pallas_src>

<mosaic_0001>
module attributes {stable_mosaic.version = 11 : i64} {
  func.func @_fused_seg_kernel(%arg0: i32, %arg1: memref<256x64xf32, #tpu.memory_space<vmem>>, %arg2: memref<32x12xf32, #tpu.memory_space<vmem>>, %arg3: memref<32x1xf32, #tpu.memory_space<vmem>>, %arg4: memref<64x256xf32, #tpu.memory_space<vmem>>, %arg5: memref<1x12x256xf32, #tpu.memory_space<vmem>>, %arg6: memref<1x32x256xf32, #tpu.memory_space<vmem>>) attributes {dimension_semantics = [#tpu.dimension_semantics<parallel>], iteration_bounds = array<i64: 2>, scalar_prefetch = 0 : i64, scratch_operands = 0 : i64, tpu.core_type = #tpu.core_type<tc>, window_params = [{pipeline_mode = #tpu.pipeline_mode<synchronous>, transform_indices = @transform_0, window_bounds = array<i64: 256, 64>}, {pipeline_mode = #tpu.pipeline_mode<synchronous>, transform_indices = @transform_1, window_bounds = array<i64: 32, 12>}, {pipeline_mode = #tpu.pipeline_mode<synchronous>, transform_indices = @transform_2, window_bounds = array<i64: 32, 1>}, {pipeline_mode = #tpu.pipeline_mode<synchronous>, transform_indices = @transform_3, window_bounds = array<i64: 64, 256>}, {transform_indices = @transform_4, window_bounds = array<i64: 1, 12, 256>}, {transform_indices = @transform_5, window_bounds = array<i64: 1, 32, 256>}]} {
    %c0 = arith.constant 0 : index
    %c0_0 = arith.constant 0 : index
    %0 = vector.load %arg1[%c0, %c0_0] : memref<256x64xf32, #tpu.memory_space<vmem>>, vector<256x64xf32>
    %c0_1 = arith.constant 0 : index
    %c0_2 = arith.constant 0 : index
    %1 = vector.load %arg4[%c0_1, %c0_2] : memref<64x256xf32, #tpu.memory_space<vmem>>, vector<64x256xf32>
    %c0_3 = arith.constant 0 : index
    %c0_4 = arith.constant 0 : index
    %c0_5 = arith.constant 0 : index
    %2 = vector.load %arg5[%c0_3, %c0_4, %c0_5] : memref<1x12x256xf32, #tpu.memory_space<vmem>>, vector<1x12x256xf32>
    %3 = vector.shape_cast %2 : vector<1x12x256xf32> to vector<12x256xf32>
    %cst = arith.constant dense<0.000000e+00> : vector<12x64xf32>
    %4 = tpu.matmul %3, %0, %cst {dimension_numbers = #tpu.dot_dimension_numbers<[1], [0], [0], [1], [0, 0, 1, 1], [], []>} : vector<12x256xf32>, vector<256x64xf32>, vector<12x64xf32> -> vector<12x64xf32>
    %c0_6 = arith.constant 0 : index
    %c0_7 = arith.constant 0 : index
    %5 = vector.load %arg2[%c0_6, %c0_7] : memref<32x12xf32, #tpu.memory_space<vmem>>, vector<32x12xf32>
    %cst_8 = arith.constant dense<0.000000e+00> : vector<32x64xf32>
    %6 = tpu.matmul %5, %4, %cst_8 {dimension_numbers = #tpu.dot_dimension_numbers<[1], [0], [0], [1], [0, 0, 1, 1], [], []>} : vector<32x12xf32>, vector<12x64xf32>, vector<32x64xf32> -> vector<32x64xf32>
    %c0_9 = arith.constant 0 : index
    %c0_10 = arith.constant 0 : index
    %7 = vector.load %arg3[%c0_9, %c0_10] : memref<32x1xf32, #tpu.memory_space<vmem>>, vector<32x1xf32>
    %8 = vector.broadcast %7 : vector<32x1xf32> to vector<32x64xf32>
    %9 = arith.addf %6, %8 : vector<32x64xf32>
    %cst_11 = arith.constant dense<0.000000e+00> : vector<32x256xf32>
    %10 = tpu.matmul %9, %1, %cst_11 {dimension_numbers = #tpu.dot_dimension_numbers<[1], [0], [0], [1], [0, 0, 1, 1], [], []>} : vector<32x64xf32>, vector<64x256xf32>, vector<32x256xf32> -> vector<32x256xf32>
    %c0_12 = arith.constant 0 : index
    %c0_13 = arith.constant 0 : index
    %c0_14 = arith.constant 0 : index
    %11 = vector.load %arg6[%c0_12, %c0_13, %c0_14] : memref<1x32x256xf32, #tpu.memory_space<vmem>>, vector<1x32x256xf32>
    %12 = vector.shape_cast %11 : vector<1x32x256xf32> to vector<32x256xf32>
    %13 = vector.shape_cast %10 : vector<32x256xf32> to vector<1x32x256xf32>
    tpu.vector_store %arg6[%c0_12, %c0_13, %c0_14], %13 {strides = array<i32>} : memref<1x32x256xf32, #tpu.memory_space<vmem>>, vector<1x32x256xf32>,
    return
  }
  func.func @transform_0(%arg0: i32) -> (i32, i32) {
    %c0_i32 = arith.constant 0 : i32
    %c0_i32_0 = arith.constant 0 : i32
    %c0_i32_1 = arith.constant 0 : i32
    return %c0_i32, %c0_i32_0 : i32, i32
  }
  func.func @transform_1(%arg0: i32) -> (i32, i32) {
    %c0_i32 = arith.constant 0 : i32
    %c0_i32_0 = arith.constant 0 : i32
    %c0_i32_1 = arith.constant 0 : i32
    return %c0_i32, %c0_i32_0 : i32, i32
  }
  func.func @transform_2(%arg0: i32) -> (i32, i32) {
    %c0_i32 = arith.constant 0 : i32
    %c0_i32_0 = arith.constant 0 : i32
    %c0_i32_1 = arith.constant 0 : i32
    return %c0_i32, %c0_i32_0 : i32, i32
  }
  func.func @transform_3(%arg0: i32) -> (i32, i32) {
    %c0_i32 = arith.constant 0 : i32
    %c0_i32_0 = arith.constant 0 : i32
    %c0_i32_1 = arith.constant 0 : i32
    return %c0_i32, %c0_i32_0 : i32, i32
  }
  func.func @transform_4(%arg0: i32) -> (i32, i32, i32) {
    %c0_i32 = arith.constant 0 : i32
    %c0_i32_0 = arith.constant 0 : i32
    %c0_i32_1 = arith.constant 0 : i32
    return %arg0, %c0_i32, %c0_i32_0 : i32, i32, i32
  }
  func.func @transform_5(%arg0: i32) -> (i32, i32, i32) {
    %c0_i32 = arith.constant 0 : i32
    %c0_i32_0 = arith.constant 0 : i32
    %c0_i32_1 = arith.constant 0 : i32
    return %arg0, %c0_i32, %c0_i32_0 : i32, i32, i32
  }
}

</mosaic_0001>

<llo_original>
// kernel: tpu_custom_call.1
$region0: #{tpu_custom_call.1}
  #allocation0 [shape = 'u32[]', space=smem, size = 0x4, offset = 0x4, fixed_abs, tag = 'smem constant byte address 0x4 - core index']
  #allocation1 [shape = 'u32[72,128]{1,0:T(1,128)}', space=vmem, size = 0x9000, scoped, tag = 'internal scratch']
  %s0 = inlined_call_operand.vmem [shape: f32[256,64], index: 0, kind: input, shape index: {}]
  %s1 = inlined_call_operand.vmem [shape: f32[32,12], index: 1, kind: input, shape index: {}]
  %s2 = inlined_call_operand.vmem [shape: f32[32,1], index: 2, kind: input, shape index: {}]
  %s3 = inlined_call_operand.vmem [shape: f32[64,256], index: 3, kind: input, shape index: {}]
  %s4 = inlined_call_operand.vmem [shape: f32[2,12,256], index: 4, kind: input, shape index: {}]
  %s5 = inlined_call_operand.hbm [shape: f32[2,32,256], index: 5, kind: output, shape index: {}]
  %s6 = sld [smem:[#allocation0]]
  $region53: #{tpu_custom_call.1} parent=0
    _
  %s8 = ssub.s32 1, %s6
  %s9 = scalar_select 0, %s8, %s6
  $region1: #{tpu_custom_call.1} parent=0
    #allocation2 [shape = 'u8[65536]{0}', space=vmem, size = 0x10000, scoped, tag = 'output window, operand 0']
    #allocation3 [shape = 's32[2]{0}', space=sflag, size = 0x8, scoped, tag = 'scoped memory for tpu_custom_call.1']
    %10 = vsyncpa [#allocation3], 0
    %s11 = scalar_lea.sflag [#allocation3], 1
    %12 = vsyncpa %s11, 0
    loop: start=0, step=1, limit=4
    $region2: #{tpu_custom_call.1} parent=1 // loop_pre_header
      _
    $region3: #{tpu_custom_call.1} parent=1 // loop_header
      %s14 = sphi 0, %s18
      %p15 = scmp.ge.s32.totalorder %s14, 4
      %s22 = sphi 0, %s22
      %s24 = sphi 0, %s22
      %s25 = sphi 0, %s24
      %s39 = sphi 0, %s25
      %s43 = sphi 0, %s43
      %s45 = sphi 0, %s43
      %s46 = sphi 0, %s45
      %s60 = sphi 0, %s46
      %s64 = sphi 0, %s64
      %s66 = sphi 0, %s64
      %s67 = sphi 0, %s66
      %s81 = sphi 0, %s67
      %s85 = sphi 0, %s85
      %s87 = sphi 0, %s85
      %s88 = sphi 0, %s87
      %s102 = sphi 0, %s88
      %s108 = sphi 0, %s110
      %s111 = sphi 0, %s108
      %s112 = sphi 0, %s111
      %s128 = sphi 0, %s112
      %s134 = sphi 0, %s136
      %s137 = sphi 0, %s134
      %s138 = sphi 0, %s137
      %s154 = sphi 0, %s138
    $region4: #{tpu_custom_call.1} parent=1 // loop_header_branch
      %17 = sbr.rel (%p15) target = $region8
    $region5: #{tpu_custom_call.1} parent=1 // loop_body
      %s19 = ssub.s32 %s14, 1
      %s20 = ssub.s32 %s14, 2
      %s21 = sadd.s32 %s14, 1
      %s23 = sadd.s32 %s22, 1
      %p26 = scmp.eq.s32.totalorder %s14, 1
      %p27 = scmp.ne.s32.totalorder %s22, %s24
      %p28 = scmp.eq.s32.totalorder %s14, 0
      %p29 = por %p27, %p28
      %p30 = scmp.ne.s32.totalorder %s22, %s24
      %p31 = scmp.eq.s32.totalorder %s19, 1
      %p32 = por %p30, %p31
      %p33 = scmp.ne.s32.totalorder %s24, %s25
      %p34 = scmp.eq.s32.totalorder %s19, 0
      %p35 = por %p33, %p34
      %p36 = scmp.ne.s32.totalorder %s24, %s25
      %p37 = scmp.eq.s32.totalorder %s20, 1
      %p38 = por %p36, %p37
      %p40 = scmp.ne.s32.totalorder %s25, %s39
      %p41 = scmp.eq.s32.totalorder %s20, 0
      %p42 = por %p40, %p41
      %s44 = sadd.s32 %s43, 1
      %p47 = scmp.eq.s32.totalorder %s14, 1
      %p48 = scmp.ne.s32.totalorder %s43, %s45
      %p49 = scmp.eq.s32.totalorder %s14, 0
      %p50 = por %p48, %p49
      %p51 = scmp.ne.s32.totalorder %s43, %s45
      %p52 = scmp.eq.s32.totalorder %s19, 1
      %p53 = por %p51, %p52
      %p54 = scmp.ne.s32.totalorder %s45, %s46
      %p55 = scmp.eq.s32.totalorder %s19, 0
      %p56 = por %p54, %p55
      %p57 = scmp.ne.s32.totalorder %s45, %s46
      %p58 = scmp.eq.s32.totalorder %s20, 1
      %p59 = por %p57, %p58
      %p61 = scmp.ne.s32.totalorder %s46, %s60
      %p62 = scmp.eq.s32.totalorder %s20, 0
      %p63 = por %p61, %p62
      %s65 = sadd.s32 %s64, 1
      %p68 = scmp.eq.s32.totalorder %s14, 1
      %p69 = scmp.ne.s32.totalorder %s64, %s66
      %p70 = scmp.eq.s32.totalorder %s14, 0
      %p71 = por %p69, %p70
      %p72 = scmp.ne.s32.totalorder %s64, %s66
      %p73 = scmp.eq.s32.totalorder %s19, 1
      %p74 = por %p72, %p73
      %p75 = scmp.ne.s32.totalorder %s66, %s67
      %p76 = scmp.eq.s32.totalorder %s19, 0
      %p77 = por %p75, %p76
      %p78 = scmp.ne.s32.totalorder %s66, %s67
      %p79 = scmp.eq.s32.totalorder %s20, 1
      %p80 = por %p78, %p79
      %p82 = scmp.ne.s32.totalorder %s67, %s81
      %p83 = scmp.eq.s32.totalorder %s20, 0
      %p84 = por %p82, %p83
      %s86 = sadd.s32 %s85, 1
      %p89 = scmp.eq.s32.totalorder %s14, 1
      %p90 = scmp.ne.s32.totalorder %s85, %s87
      %p91 = scmp.eq.s32.totalorder %s14, 0
      %p92 = por %p90, %p91
      %p93 = scmp.ne.s32.totalorder %s85, %s87
      %p94 = scmp.eq.s32.totalorder %s19, 1
      %p95 = por %p93, %p94
      %p96 = scmp.ne.s32.totalorder %s87, %s88
      %p97 = scmp.eq.s32.totalorder %s19, 0
      %p98 = por %p96, %p97
      %p99 = scmp.ne.s32.totalorder %s87, %s88
      %p100 = scmp.eq.s32.totalorder %s20, 1
      %p101 = por %p99, %p100
      %p103 = scmp.ne.s32.totalorder %s88, %s102
      %p104 = scmp.eq.s32.totalorder %s20, 0
      %p105 = por %p103, %p104
      %s106 = ssub.s32 %s14, %s21
      %p107 = scmp.eq.s32.totalorder %s106, 0
      %s109 = sadd.s32 %s108, 1
      %s110 = scalar_select %p107, %s108, %s109
      %p113 = pneg %p107
      %p114 = scmp.eq.s32.totalorder %s14, 1
      %p115 = por %p113, %p114
      %p116 = scmp.ne.s32.totalorder %s108, %s111
      %p117 = scmp.eq.s32.totalorder %s14, 0
      %p118 = por %p116, %p117
      %p119 = scmp.ne.s32.totalorder %s108, %s111
      %p120 = scmp.eq.s32.totalorder %s19, 1
      %p121 = por %p119, %p120
      %p122 = scmp.ne.s32.totalorder %s111, %s112
      %p123 = scmp.eq.s32.totalorder %s19, 0
      %p124 = por %p122, %p123
      %p125 = scmp.ne.s32.totalorder %s111, %s112
      %p126 = scmp.eq.s32.totalorder %s20, 1
      %p127 = por %p125, %p126
      %p129 = scmp.ne.s32.totalorder %s112, %s128
      %p130 = scmp.eq.s32.totalorder %s20, 0
      %p131 = por %p129, %p130
      %s132 = ssub.s32 %s14, %s21
      %p133 = scmp.eq.s32.totalorder %s132, 0
      %s135 = sadd.s32 %s134, 1
      %s136 = scalar_select %p133, %s134, %s135
      %p139 = pneg %p133
      %p140 = scmp.eq.s32.totalorder %s14, 1
      %p141 = por %p139, %p140
      %p142 = scmp.ne.s32.totalorder %s134, %s137
      %p143 = scmp.eq.s32.totalorder %s14, 0
      %p144 = por %p142, %p143
      %p145 = scmp.ne.s32.totalorder %s134, %s137
      %p146 = scmp.eq.s32.totalorder %s19, 1
      %p147 = por %p145, %p146
      %p148 = scmp.ne.s32.totalorder %s137, %s138
      %p149 = scmp.eq.s32.totalorder %s19, 0
      %p150 = por %p148, %p149
      %p151 = scmp.ne.s32.totalorder %s137, %s138
      %p152 = scmp.eq.s32.totalorder %s20, 1
      %p153 = por %p151, %p152
      %p155 = scmp.ne.s32.totalorder %s138, %s154
      %p156 = scmp.eq.s32.totalorder %s20, 0
      %p157 = por %p155, %p156
      %p158 = scmp.le.s32.totalorder 1, %s14
      %p159 = scmp.lt.s32.totalorder %s14, 3
      %p160 = pnand %p158, %p159
      %p161 = pneg %p160
      // Predicated region
      $region9: #{tpu_custom_call.1} parent=5 // pred_check
        _
      $region10: #{tpu_custom_call.1} parent=5 // pred_check_branch
        %163 = sbr.rel (%p160) target = $region12
      $region11: #{tpu_custom_call.1} parent=5 // pred_region
        %s164 = ssub.s32 %s14, 1
        // Predicated region
        $region13: #{tpu_custom_call.1} parent=11 // pred_check
          %p165 = pneg %p35
        $region14: #{tpu_custom_call.1} parent=11 // pred_check_branch
          %167 = sbr.rel (%p165) target = $region16
        $region15: #{tpu_custom_call.1} parent=11 // pred_region
          _
        $region16: #{tpu_custom_call.1} parent=11 // pred_fallthru
          _
        // Predicated region
        $region17: #{tpu_custom_call.1} parent=11 // pred_check
          %p168 = pneg %p56
        $region18: #{tpu_custom_call.1} parent=11 // pred_check_branch
          %170 = sbr.rel (%p168) target = $region20
        $region19: #{tpu_custom_call.1} parent=11 // pred_region
          _
        $region20: #{tpu_custom_call.1} parent=11 // pred_fallthru
          _
        // Predicated region
        $region21: #{tpu_custom_call.1} parent=11 // pred_check
          %p171 = pneg %p77
        $region22: #{tpu_custom_call.1} parent=11 // pred_check_branch
          %173 = sbr.rel (%p171) target = $region24
        $region23: #{tpu_custom_call.1} parent=11 // pred_region
          _
        $region24: #{tpu_custom_call.1} parent=11 // pred_fallthru
          _
        // Predicated region
        $region25: #{tpu_custom_call.1} parent=11 // pred_check
          %p174 = pneg %p98
        $region26: #{tpu_custom_call.1} parent=11 // pred_check_branch
          %176 = sbr.rel (%p174) target = $region28
        $region27: #{tpu_custom_call.1} parent=11 // pred_region
          _
        $region28: #{tpu_custom_call.1} parent=11 // pred_fallthru
          _
      $region12: #{tpu_custom_call.1} parent=5 // pred_fallthru
        _
      %p177 = scmp.lt.s32.totalorder %s14, 2
      // Predicated region
      $region29: #{tpu_custom_call.1} parent=5 // pred_check
        %p178 = pneg %p177
      $region30: #{tpu_custom_call.1} parent=5 // pred_check_branch
        %180 = sbr.rel (%p178) target = $region32
      $region31: #{tpu_custom_call.1} parent=5 // pred_region
        // Predicated region
        $region33: #{tpu_custom_call.1} parent=31 // pred_check
          %p181 = pneg %p118
        $region34: #{tpu_custom_call.1} parent=31 // pred_check_branch
          %183 = sbr.rel (%p181) target = $region36
        $region35: #{tpu_custom_call.1} parent=31 // pred_region
          %p184 = scmp.lt.s32.totalorder %s14, 1
          %s185 = scalar_select %p184, %s14, 1
          %s186 = smul.addr %s185, 4
          %s187 = smul.addr %s186, 8
          %s188 = scalar_lea.vmem %s4, %s187
        $region36: #{tpu_custom_call.1} parent=31 // pred_fallthru
          _
      $region32: #{tpu_custom_call.1} parent=5 // pred_fallthru
        _
      %p189 = scmp.le.s32.totalorder 1, %s14
      %p190 = scmp.lt.s32.totalorder %s14, 3
      %p191 = pnand %p189, %p190
      %p192 = pneg %p191
      // Predicated region
      $region37: #{tpu_custom_call.1} parent=5 // pred_check
        _
      $region38: #{tpu_custom_call.1} parent=5 // pred_check_branch
        %194 = sbr.rel (%p191) target = $region40
      $region39: #{tpu_custom_call.1} parent=5 // pred_region
        %s195 = ssub.s32 %s14, 1
        %p196 = pneg %p35
        %p197 = pneg %p32
        %p198 = pneg %p56
        %p199 = pneg %p53
        %p200 = pneg %p77
        %p201 = pneg %p74
        %p202 = pneg %p98
        %p203 = pneg %p95
        %p204 = scmp.lt.s32.totalorder %s19, 1
        %s205 = scalar_select %p204, %s19, 1
        %s206 = smul.addr %s205, 4
        %s207 = smul.addr %s206, 8
        %s208 = scalar_lea.vmem %s4, %s207
        %p209 = pneg %p124
        %p210 = pneg %p121
        %p211 = pneg %p150
        %p212 = pneg %p147
        %s213 = sand.u32 %s137, 1
        %s214 = scalar_lea.sflag [#allocation3], %s213
        %s215 = sand.u32 %s137, 1
        %s216 = smul.addr %s215, 64
        %s217 = scalar_lea.vmem [#allocation2], %s216
        %p218 = scmp.lt.s32.totalorder %s19, 1
        %s219 = scalar_select %p218, %s19, 1
        %s220 = smul.addr %s219, 4
        %s221 = smul.addr %s220, 8
        %s222 = scalar_lea.vmem %s4, %s221
        %v223 = vld [vmem:[%s0] sm:$0xff]
        %v224 = vld [vmem:[%s0 + $0x8] sm:$0xff]
        %v225 = vld [vmem:[%s0 + $0x10] sm:$0xff]
        %v226 = vld [vmem:[%s0 + $0x18] sm:$0xff]
        %v227 = vld [vmem:[%s0 + $0x20] sm:$0xff]
        %v228 = vld [vmem:[%s0 + $0x28] sm:$0xff]
        %v229 = vld [vmem:[%s0 + $0x30] sm:$0xff]
        %v230 = vld [vmem:[%s0 + $0x38] sm:$0xff]
        %v231 = vld [vmem:[%s0 + $0x40] sm:$0xff]
        %v232 = vld [vmem:[%s0 + $0x48] sm:$0xff]
        %v233 = vld [vmem:[%s0 + $0x50] sm:$0xff]
        %v234 = vld [vmem:[%s0 + $0x58] sm:$0xff]
        %v235 = vld [vmem:[%s0 + $0x60] sm:$0xff]
        %v236 = vld [vmem:[%s0 + $0x68] sm:$0xff]
        %v237 = vld [vmem:[%s0 + $0x70] sm:$0xff]
        %v238 = vld [vmem:[%s0 + $0x78] sm:$0xff]
        %v239 = vld [vmem:[%s0 + $0x80] sm:$0xff]
        %v240 = vld [vmem:[%s0 + $0x88] sm:$0xff]
        %v241 = vld [vmem:[%s0 + $0x90] sm:$0xff]
        %v242 = vld [vmem:[%s0 + $0x98] sm:$0xff]
        %v243 = vld [vmem:[%s0 + $0xa0] sm:$0xff]
        %v244 = vld [vmem:[%s0 + $0xa8] sm:$0xff]
        %v245 = vld [vmem:[%s0 + $0xb0] sm:$0xff]
        %v246 = vld [vmem:[%s0 + $0xb8] sm:$0xff]
        %v247 = vld [vmem:[%s0 + $0xc0] sm:$0xff]
        %v248 = vld [vmem:[%s0 + $0xc8] sm:$0xff]
        %v249 = vld [vmem:[%s0 + $0xd0] sm:$0xff]
        %v250 = vld [vmem:[%s0 + $0xd8] sm:$0xff]
        %v251 = vld [vmem:[%s0 + $0xe0] sm:$0xff]
        %v252 = vld [vmem:[%s0 + $0xe8] sm:$0xff]
        %v253 = vld [vmem:[%s0 + $0xf0] sm:$0xff]
        %v254 = vld [vmem:[%s0 + $0xf8] sm:$0xff]
        %v255 = vld [vmem:[%s3] sm:$0xff]
        %v256 = vld [vmem:[%s3 + $0x8] sm:$0xff]
        %v257 = vld [vmem:[%s3 + $0x10] sm:$0xff]
        %v258 = vld [vmem:[%s3 + $0x18] sm:$0xff]
        %v259 = vld [vmem:[%s3 + $0x20] sm:$0xff]
        %v260 = vld [vmem:[%s3 + $0x28] sm:$0xff]
        %v261 = vld [vmem:[%s3 + $0x30] sm:$0xff]
        %v262 = vld [vmem:[%s3 + $0x38] sm:$0xff]
        %v263 = vld [vmem:[%s3 + $0x40] sm:$0xff]
        %v264 = vld [vmem:[%s3 + $0x48] sm:$0xff]
        %v265 = vld [vmem:[%s3 + $0x50] sm:$0xff]
        %v266 = vld [vmem:[%s3 + $0x58] sm:$0xff]
        %v267 = vld [vmem:[%s3 + $0x60] sm:$0xff]
        %v268 = vld [vmem:[%s3 + $0x68] sm:$0xff]
        %v269 = vld [vmem:[%s3 + $0x70] sm:$0xff]
        %v270 = vld [vmem:[%s3 + $0x78] sm:$0xff]
        %v271 = vld [vmem:[%s222] sm:$0xff]
        %v272 = vld [vmem:[%s222 + $0x8] sm:$0xff]
        %v273 = vld [vmem:[%s222 + $0x10] sm:$0xf]
        %v274 = vld [vmem:[%s222 + $0x18] sm:$0xf]
        %275 = vmatpush.msra.mxu0 %v238
        %276 = vmatpush.msra.mxu0 %v237
        %277 = vmatpush.msra.mxu0 %v236
        %278 = vmatpush.msra.mxu0 %v235
        %279 = vmatpush.msra.mxu0 %v234
        %280 = vmatpush.msra.mxu0 %v233
        %281 = vmatpush.msra.mxu0 %v232
        %282 = vmatpush.msra.mxu0 %v231
        %283 = vmatpush.msra.mxu0 %v230
        %284 = vmatpush.msra.mxu0 %v229
        %285 = vmatpush.msra.mxu0 %v228
        %286 = vmatpush.msra.mxu0 %v227
        %287 = vmatpush.msra.mxu0 %v226
        %288 = vmatpush.msra.mxu0 %v225
        %289 = vmatpush.msra.mxu0 %v224
        %290 = vmatpush.msra.mxu0 %v223
        %291 = vmatmul.f32.gmra.mxu0 %v271
        %v292 = vpop.f32.mrf.mxu0
        %v293 = vadd.f32 0.0, %v292
        %294 = vmatmul.f32.gmra.mxu0 %v273
        %v295 = vpop.f32.mrf.mxu0
        %v296 = vadd.f32 0.0, %v295
        %297 = vdwg.mxu0
        %298 = vmatpush.msra.mxu0 %v254
        %299 = vmatpush.msra.mxu0 %v253
        %300 = vmatpush.msra.mxu0 %v252
        %301 = vmatpush.msra.mxu0 %v251
        %302 = vmatpush.msra.mxu0 %v250
        %303 = vmatpush.msra.mxu0 %v249
        %304 = vmatpush.msra.mxu0 %v248
        %305 = vmatpush.msra.mxu0 %v247
        %306 = vmatpush.msra.mxu0 %v246
        %307 = vmatpush.msra.mxu0 %v245
        %308 = vmatpush.msra.mxu0 %v244
        %309 = vmatpush.msra.mxu0 %v243
        %310 = vmatpush.msra.mxu0 %v242
        %311 = vmatpush.msra.mxu0 %v241
        %312 = vmatpush.msra.mxu0 %v240
        %313 = vmatpush.msra.mxu0 %v239
        %314 = vmatmul.f32.gmra.mxu0 %v272
        %v315 = vpop.f32.mrf.mxu0
        %v316 = vadd.f32 %v293, %v315
        %317 = vmatmul.f32.gmra.mxu0 %v274
        %v318 = vpop.f32.mrf.mxu0
        %v319 = vadd.f32 %v296, %v318
        %320 = vdwg.mxu0
        %v321 = vld [vmem:[%s1] sm:$0xff]
        %v322 = vld [vmem:[%s1 + $0x8] sm:$0xff]
        %v323 = vld [vmem:[%s1 + $0x10] sm:$0xff]
        %v324 = vld [vmem:[%s1 + $0x18] sm:$0xff]
        %v325 = vld [vmem:[%s2] sm:$0xff]
        %v326 = vld [vmem:[%s2 + $0x8] sm:$0xff]
        %v327 = vld [vmem:[%s2 + $0x10] sm:$0xff]
        %v328 = vld [vmem:[%s2 + $0x18] sm:$0xff]
        %330 = vset.pattern.permute.xlu0 0
        %331 = vperm.xlu0 %330, %v325
        %v332 = vpop.permute.xlu0 %331
        %335 = vset.pattern.permute.xlu0 0
        %336 = vperm.xlu0 %335, %v326
        %v337 = vpop.permute.xlu0 %336
        %340 = vset.pattern.permute.xlu0 0
        %341 = vperm.xlu0 %340, %v327
        %v342 = vpop.permute.xlu0 %341
        %345 = vset.pattern.permute.xlu0 0
        %346 = vperm.xlu0 %345, %v328
        %v347 = vpop.permute.xlu0 %346
        %vm349 = vcmask 97280
        %v351 = vsel %vm349, %v321, 0
        %v354 = vsel %vm349, %v322, 0
        %v357 = vsel %vm349, %v323, 0
        %v360 = vsel %vm349, %v324, 0
        %vm362 = vcmask 1043456
        %v364 = vsel %vm362, %v319, 0
        %366 = vmatpush.msra.mxu0 0.0
        %367 = vmatpush.msra.mxu0 0.0
        %368 = vmatpush.msra.mxu0 0.0
        %369 = vmatpush.msra.mxu0 0.0
        %370 = vmatpush.msra.mxu0 0.0
        %371 = vmatpush.msra.mxu0 0.0
        %372 = vmatpush.msra.mxu0 0.0
        %373 = vmatpush.msra.mxu0 0.0
        %374 = vmatpush.msra.mxu0 0.0
        %375 = vmatpush.msra.mxu0 0.0
        %376 = vmatpush.msra.mxu0 0.0
        %377 = vmatpush.msra.mxu0 0.0
        %378 = vmatpush.msra.mxu0 0.0
        %379 = vmatpush.msra.mxu0 0.0
        %380 = vmatpush.msra.mxu0 %v364
        %381 = vmatpush.msra.mxu0 %v316
        %382 = vmatmul.f32.gmra.mxu0 %v351
        %v383 = vpop.f32.mrf.mxu0
        %v384 = vadd.f32 %v332, %v383
        %385 = vmatmul.f32.gmra.mxu0 %v354
        %v386 = vpop.f32.mrf.mxu0
        %v387 = vadd.f32 %v337, %v386
        %388 = vmatmul.f32.gmra.mxu0 %v357
        %v389 = vpop.f32.mrf.mxu0
        %v390 = vadd.f32 %v342, %v389
        %391 = vmatmul.f32.gmra.mxu0 %v360
        %v392 = vpop.f32.mrf.mxu0
        %v393 = vadd.f32 %v347, %v392
        %394 = vdwg.mxu0
        %vm395 = vcmask 523264
        %v397 = vsel %vm395, %v384, 0
        %v400 = vsel %vm395, %v387, 0
        %v403 = vsel %vm395, %v390, 0
        %v406 = vsel %vm395, %v393, 0
        %408 = vmatpush.msra.mxu0 0.0
        %409 = vmatpush.msra.mxu0 0.0
        %410 = vmatpush.msra.mxu0 0.0
        %411 = vmatpush.msra.mxu0 0.0
        %412 = vmatpush.msra.mxu0 0.0
        %413 = vmatpush.msra.mxu0 0.0
        %414 = vmatpush.msra.mxu0 0.0
        %415 = vmatpush.msra.mxu0 0.0
        %416 = vmatpush.msra.mxu0 %v269
        %417 = vmatpush.msra.mxu0 %v267
        %418 = vmatpush.msra.mxu0 %v265
        %419 = vmatpush.msra.mxu0 %v263
        %420 = vmatpush.msra.mxu0 %v261
        %421 = vmatpush.msra.mxu0 %v259
        %422 = vmatpush.msra.mxu0 %v257
        %423 = vmatpush.msra.mxu0 %v255
        %424 = vmatmul.f32.gmra.mxu0 %v397
        %v425 = vpop.f32.mrf.mxu0
        %v426 = vadd.f32 0.0, %v425
        %427 = vmatmul.f32.gmra.mxu0 %v400
        %v428 = vpop.f32.mrf.mxu0
        %v429 = vadd.f32 0.0, %v428
        %430 = vmatmul.f32.gmra.mxu0 %v403
        %v431 = vpop.f32.mrf.mxu0
        %v432 = vadd.f32 0.0, %v431
        %433 = vmatmul.f32.gmra.mxu0 %v406
        %v434 = vpop.f32.mrf.mxu0
        %v435 = vadd.f32 0.0, %v434
        %436 = vdwg.mxu0
        %437 = vmatpush.msra.mxu0 0.0
        %438 = vmatpush.msra.mxu0 0.0
        %439 = vmatpush.msra.mxu0 0.0
        %440 = vmatpush.msra.mxu0 0.0
        %441 = vmatpush.msra.mxu0 0.0
        %442 = vmatpush.msra.mxu0 0.0
        %443 = vmatpush.msra.mxu0 0.0
        %444 = vmatpush.msra.mxu0 0.0
        %445 = vmatpush.msra.mxu0 %v270
        %446 = vmatpush.msra.mxu0 %v268
        %447 = vmatpush.msra.mxu0 %v266
        %448 = vmatpush.msra.mxu0 %v264
        %449 = vmatpush.msra.mxu0 %v262
        %450 = vmatpush.msra.mxu0 %v260
        %451 = vmatpush.msra.mxu0 %v258
        %452 = vmatpush.msra.mxu0 %v256
        %453 = vmatmul.f32.gmra.mxu0 %v397
        %v454 = vpop.f32.mrf.mxu0
        %v455 = vadd.f32 0.0, %v454
        %456 = vmatmul.f32.gmra.mxu0 %v400
        %v457 = vpop.f32.mrf.mxu0
        %v458 = vadd.f32 0.0, %v457
        %459 = vmatmul.f32.gmra.mxu0 %v403
        %v460 = vpop.f32.mrf.mxu0
        %v461 = vadd.f32 0.0, %v460
        %462 = vmatmul.f32.gmra.mxu0 %v406
        %v463 = vpop.f32.mrf.mxu0
        %v464 = vadd.f32 0.0, %v463
        %465 = vdwg.mxu0
        %466 = vst [vmem:[%s217] sm:$0xff] %v426
        %467 = vst [vmem:[%s217 + $0x8] sm:$0xff] %v455
        %468 = vst [vmem:[%s217 + $0x10] sm:$0xff] %v429
        %469 = vst [vmem:[%s217 + $0x18] sm:$0xff] %v458
        %470 = vst [vmem:[%s217 + $0x20] sm:$0xff] %v432
        %471 = vst [vmem:[%s217 + $0x28] sm:$0xff] %v461
        %472 = vst [vmem:[%s217 + $0x30] sm:$0xff] %v435
        %473 = vst [vmem:[%s217 + $0x38] sm:$0xff] %v464
        %s474 = sand.u32 %s137, 1
        %s475 = scalar_lea.sflag [#allocation3], %s474
        %s476 = sand.u32 %s137, 1
        %s477 = smul.addr %s476, 64
        %s478 = scalar_lea.vmem [#allocation2], %s477
        // Predicated region
        $region41: #{tpu_custom_call.1} parent=39 // pred_check
          %p479 = pneg %p147
        $region42: #{tpu_custom_call.1} parent=39 // pred_check_branch
          %481 = sbr.rel (%p479) target = $region44
        $region43: #{tpu_custom_call.1} parent=39 // pred_region
          %483 = vsyncadd %s475, 0
          %s484 = smul.addr %s19, 8
          %s485 = smul.addr %s484, 8
          %s486 = scalar_lea.hbm %s5, %s485
          %s487 = sshll.u32 %s478, 4
          %s488 = int_to_ptr.vmem [resolvable:$true] %s487
          %s489 = sshll.u32 %s486, 4
          %s490 = int_to_ptr.hbm [resolvable:$true] %s489
          %495 = dma.vmem_to_hbm [thread:$0]  %s488, 1024, %s490, %s475, 256, 256, 16
        $region44: #{tpu_custom_call.1} parent=39 // pred_fallthru
          _
      $region40: #{tpu_custom_call.1} parent=5 // pred_fallthru
        _
      %p496 = scmp.le.s32.totalorder 2, %s14
      // Predicated region
      $region45: #{tpu_custom_call.1} parent=5 // pred_check
        %p497 = pneg %p496
      $region46: #{tpu_custom_call.1} parent=5 // pred_check_branch
        %499 = sbr.rel (%p497) target = $region48
      $region47: #{tpu_custom_call.1} parent=5 // pred_region
        %s500 = ssub.s32 %s14, 2
        // Predicated region
        $region49: #{tpu_custom_call.1} parent=47 // pred_check
          %p501 = pneg %p153
        $region50: #{tpu_custom_call.1} parent=47 // pred_check_branch
          %503 = sbr.rel (%p501) target = $region52
        $region51: #{tpu_custom_call.1} parent=47 // pred_region
          %s504 = sand.u32 %s138, 1
          %s505 = scalar_lea.sflag [#allocation3], %s504
          %s506 = sand.u32 %s138, 1
          %s507 = smul.addr %s506, 64
          %s508 = scalar_lea.vmem [#allocation2], %s507
          %510 = dma.done %s505, 1024
        $region52: #{tpu_custom_call.1} parent=47 // pred_fallthru
          _
      $region48: #{tpu_custom_call.1} parent=5 // pred_fallthru
        _
    $region6: #{tpu_custom_call.1} parent=1 // loop_footer
      %s18 = sadd.s32 1, %s14
    $region7: #{tpu_custom_call.1} parent=1 // loop_footer_branch
      %13 = sbr.rel target = $region3
    $region8: #{tpu_custom_call.1} parent=1 // loop_exit
      _
    %511 = vsyncpa [#allocation3], 1
    %s512 = scalar_lea.sflag [#allocation3], 1
    %513 = vsyncpa %s512, 1

</llo_original>
